<compile_context>
chip_gen: v5e
topology: v5e:2x2
jax: 0.10.0
libtpu: 0.0.40
codegen_flags: <defaults>
</compile_context>

<pallas_src>
import functools

import numpy as np
import jax
import jax.numpy as jnp
from jax.experimental import pallas as pl
from jax.experimental.pallas import tpu as pltpu

OUT_LANES = 128


def fused_head_decode_kernel(lvl_ref, valid_ref, base_ref, sx_ref, sy_ref,
                             tbox_ref, x_ref, w_ref, b_ref, g_ref, out_ref,
                             *, num_anchors, lane_tile):
    """One grid step == one 128-lane spatial tile (positions of a single level).

    lvl_ref   (SMEM, prefetch, int32[T]) : level of each tile (used by index_maps)
    valid_ref (SMEM, int32[T])           : number of valid positions in tile
    base_ref  (SMEM, int32[T])           : global flat prior index of first position
    sx_ref/sy_ref (SMEM, f32[T])         : stride * inv_scale_{x,y} of tile's level
    tbox_ref  (SMEM, f32[5])             : [tx1, ty1, tx2, ty2, target_area]
    x_ref  (C_in, TILE) bf16             : packed level features (channels x positions)
    w_ref  (1, ROWS_PAD, C_in) bf16      : reduced head weights (class/anchor/scale folded)
    b_ref  (1, ROWS_PAD, 1)   f32        : reduced head bias (log(w/2*inv_s) folded into tw/th)
    g_ref  (2, TILE) f32                 : [cx*inv_sx ; cy*inv_sy]
    out_ref (1, 1, 128) f32              : [score, iou, cls, x1, y1, x2, y2, idx, 0...]
    """
    del lvl_ref  # only consumed by the index_maps
    t = pl.program_id(0)
    na = num_anchors

    valid = valid_ref[t]
    base_idx = base_ref[t]
    sx = sx_ref[t]
    sy = sy_ref[t]
    tx1 = tbox_ref[0]
    ty1 = tbox_ref[1]
    tx2 = tbox_ref[2]
    ty2 = tbox_ref[3]
    target_area = tbox_ref[4]

    # Head 1x1 conv on the reduced, class-folded weights: one bf16 MXU matmul.
    # Row layout: [tx_a0.. | ty_a0.. | cls_a0.. | tw_a0.. | th_a0..] (+ zero pad rows)
    preds = jnp.dot(w_ref[0], x_ref[...],
                    preferred_element_type=jnp.float32) + b_ref[0]

    sig = jax.nn.sigmoid(preds[0:3 * na, :])        # tx, ty, cls_target rows
    txy = sig[0:2 * na, :]                          # (2*na, TILE)
    cls_t = sig[2 * na:3 * na, :]                   # (na, TILE)
    # exp(tw + log(w/2*inv_sx)) == (w/2*inv_sx)*exp(tw): already-scaled half sizes.
    halves = jnp.exp(preds[3 * na:5 * na, :])       # (2*na, TILE) -> [w_half ; h_half]
    # NOTE: objectness is skipped entirely; the reference module's returned
    # values never use it (target_scores = iou * cls_score only).

    rid = jax.lax.broadcasted_iota(jnp.int32, (2 * na, 1), 0)
    is_x = rid < na
    s_col = jnp.where(is_x, sx, sy)                 # per-row stride (x rows / y rows)
    tmin = jnp.where(is_x, tx1, ty1)
    tmax = jnp.where(is_x, tx2, ty2)

    gxy = jnp.concatenate(
        [jnp.broadcast_to(g_ref[0:1, :], (na, lane_tile)),
         jnp.broadcast_to(g_ref[1:2, :], (na, lane_tile))], axis=0)  # (2*na, TILE)

    # mmdet YOLOBBoxCoder.decode + scale_boxes (scale folded into gxy/s_col/halves)
    centers = gxy + (txy - 0.5) * s_col
    box_min = centers - halves                      # rows: [bx1 ; by1]
    box_max = centers + halves                      # rows: [bx2 ; by2]

    # IoU against the (constant) target box, x/y vectorized together.
    imin = jnp.maximum(box_min, tmin)
    imax = jnp.minimum(box_max, tmax)
    iwh = jnp.maximum(imax - imin, 0.0)
    inter = iwh[0:na, :] * iwh[na:2 * na, :]                    # (na, TILE)
    area = 4.0 * halves[0:na, :] * halves[na:2 * na, :]         # (2w/2)*(2h/2)
    iou = inter / (area + target_area - inter)                  # exact division

    lane = jax.lax.broadcasted_iota(jnp.int32, (na, lane_tile), 1)
    arow = jax.lax.broadcasted_iota(jnp.int32, (na, lane_tile), 0)
    score = jnp.where(lane < valid, iou * cls_t, -jnp.inf)
    # flatten order: position-major, anchor-fastest (matches permute+reshape)
    gidx = base_idx + lane * na + arow

    def reduce2(v, red):
        return red(red(v, axis=1, keepdims=True), axis=0, keepdims=True)

    m = reduce2(score, jnp.max)                                  # (1, 1)
    idx = reduce2(jnp.where(score == m, gidx, jnp.int32(2 ** 30)), jnp.min)
    sel = gidx == idx

    def pick(v):
        return reduce2(jnp.where(sel, v, 0.0), jnp.sum)

    bx1 = box_min[0:na, :]
    by1 = box_min[na:2 * na, :]
    bx2 = box_max[0:na, :]
    by2 = box_max[na:2 * na, :]

    row = jnp.concatenate(
        [m, pick(iou), pick(cls_t), pick(bx1), pick(by1), pick(bx2),
         pick(by2), idx.astype(jnp.float32),
         jnp.zeros((1, OUT_LANES - 8), jnp.float32)], axis=1)    # (1, 128)
    out_ref[0] = row


def yolo_v3_r_forward(feats, head_ws, head_bs, level_shapes, level_strides,
                      base_sizes, target_class, target_box, scale_factor,
                      num_attrib, lane_tile=128):
    """feats[l]: (HW_l, C_in); head_ws[l]: (C_in, NA*ATTRIB); head_bs[l]: (NA*ATTRIB,).

    target_class is a Python int -> the class column is folded into the weights.
    scale_factor is the multiplier applied by scale_boxes (1 / metainfo scale).
    """
    num_levels = len(feats)
    na = len(base_sizes[0])
    c_in = feats[0].shape[1]
    inv_sx = float(scale_factor[0])
    inv_sy = float(scale_factor[1])

    rows = 5 * na
    rows_pad = ((rows + 7) // 8) * 8

    # ---- fold target-class / anchor half-sizes / scale factor into reduced weights
    w_red = np.zeros((num_levels, rows_pad, c_in), np.float32)
    b_red = np.zeros((num_levels, rows_pad, 1), np.float32)
    for l in range(num_levels):
        W = np.asarray(head_ws[l], np.float32)       # out-chan order: a*num_attrib + attrib
        B = np.asarray(head_bs[l], np.float32)
        for a in range(na):
            base = a * num_attrib
            bw, bh = base_sizes[l][a]
            w_red[l, 0 * na + a] = W[:, base + 0]                       # tx
            b_red[l, 0 * na + a, 0] = B[base + 0]
            w_red[l, 1 * na + a] = W[:, base + 1]                       # ty
            b_red[l, 1 * na + a, 0] = B[base + 1]
            w_red[l, 2 * na + a] = W[:, base + 5 + target_class]        # cls (target only)
            b_red[l, 2 * na + a, 0] = B[base + 5 + target_class]
            w_red[l, 3 * na + a] = W[:, base + 2]                       # tw
            b_red[l, 3 * na + a, 0] = B[base + 2] + np.log(0.5 * bw * inv_sx)
            w_red[l, 4 * na + a] = W[:, base + 3]                       # th
            b_red[l, 4 * na + a, 0] = B[base + 3] + np.log(0.5 * bh * inv_sy)

    # ---- pack every level's positions along one lane axis in uniform tiles
    x_blocks, g_blocks = [], []
    lvl_of_tile, valid_of_tile, base_of_tile = [], [], []
    sx_of_tile, sy_of_tile = [], []
    off = 0
    for l, ((h, w), stride) in enumerate(zip(level_shapes, level_strides)):
        hw = h * w
        n_t = -(-hw // lane_tile)
        hw_pad_l = n_t * lane_tile
        xt = jnp.transpose(jnp.asarray(feats[l]))                 # (C_in, HW)
        x_blocks.append(jnp.pad(xt, ((0, 0), (0, hw_pad_l - hw))))
        ys, xs = np.meshgrid(np.arange(h, dtype=np.float32),
                             np.arange(w, dtype=np.float32), indexing="ij")
        g = np.zeros((2, hw_pad_l), np.float32)
        g[0, :hw] = (xs.reshape(-1) + 0.5) * stride * inv_sx      # cx (scaled)
        g[1, :hw] = (ys.reshape(-1) + 0.5) * stride * inv_sy      # cy (scaled)
        g_blocks.append(g)
        for ti in range(n_t):
            lvl_of_tile.append(l)
            valid_of_tile.append(min(lane_tile, hw - ti * lane_tile))
            base_of_tile.append(off + ti * lane_tile * na)
            sx_of_tile.append(float(stride) * inv_sx)
            sy_of_tile.append(float(stride) * inv_sy)
        off += hw * na
    num_tiles = len(lvl_of_tile)

    x_packed = jnp.concatenate(x_blocks, axis=1).astype(jnp.bfloat16)
    g_packed = jnp.asarray(np.concatenate(g_blocks, axis=1))
    w_all = jnp.asarray(w_red).astype(jnp.bfloat16)
    b_all = jnp.asarray(b_red)

    lvl_map = jnp.asarray(np.asarray(lvl_of_tile, np.int32))
    valid_arr = jnp.asarray(np.asarray(valid_of_tile, np.int32))
    base_arr = jnp.asarray(np.asarray(base_of_tile, np.int32))
    sx_arr = jnp.asarray(np.asarray(sx_of_tile, np.float32))
    sy_arr = jnp.asarray(np.asarray(sy_of_tile, np.float32))
    tx1, ty1, tx2, ty2 = [float(v) for v in target_box]
    tbox = jnp.asarray(np.asarray(
        [tx1, ty1, tx2, ty2, (tx2 - tx1) * (ty2 - ty1)], np.float32))

    kern = functools.partial(fused_head_decode_kernel, num_anchors=na,
                             lane_tile=lane_tile)

    out = pl.pallas_call(
        kern,
        out_shape=jax.ShapeDtypeStruct((num_tiles, 1, OUT_LANES), jnp.float32),
        grid_spec=pltpu.PrefetchScalarGridSpec(
            num_scalar_prefetch=1,                      # lvl_map -> index_maps
            grid=(num_tiles,),
            in_specs=[
                pl.BlockSpec(memory_space=pltpu.MemorySpace.SMEM),   # valid
                pl.BlockSpec(memory_space=pltpu.MemorySpace.SMEM),   # base idx
                pl.BlockSpec(memory_space=pltpu.MemorySpace.SMEM),   # stride_x'
                pl.BlockSpec(memory_space=pltpu.MemorySpace.SMEM),   # stride_y'
                pl.BlockSpec(memory_space=pltpu.MemorySpace.SMEM),   # target box
                pl.BlockSpec((c_in, lane_tile), lambda t, lvl: (0, t)),           # x
                pl.BlockSpec((1, rows_pad, c_in), lambda t, lvl: (lvl[t], 0, 0)),  # w
                pl.BlockSpec((1, rows_pad, 1), lambda t, lvl: (lvl[t], 0, 0)),     # b
                pl.BlockSpec((2, lane_tile), lambda t, lvl: (0, t)),               # geom
            ],
            out_specs=pl.BlockSpec((1, 1, OUT_LANES), lambda t, lvl: (t, 0, 0)),
        ),
        compiler_params=pltpu.CompilerParams(
            dimension_semantics=("parallel",)),
    )(lvl_map, valid_arr, base_arr, sx_arr, sy_arr, tbox,
      x_packed, w_all, b_all, g_packed)

    # Tiny cross-tile reduce: tiles are in increasing global-index order, so
    # the first tile attaining the max score also holds the min-index winner.
    rows_out = out[:, 0, 0:8]                                    # (T, 8)
    best = rows_out[jnp.argmax(rows_out[:, 0])]
    return best   # [score, iou, cls_score, x1, y1, x2, y2, idx]


if __name__ == "__main__":
    C_IN = 32
    NUM_CLASSES = 8
    NUM_ANCHORS = 3
    NUM_ATTRIB = 5 + NUM_CLASSES
    LEVEL_HW = [(8, 8), (4, 4), (2, 2)]
    LEVEL_STRIDES = [4, 8, 16]
    BASE_SIZES = [
        [(10., 13.), (16., 30.), (33., 23.)],
        [(30., 61.), (62., 45.), (59., 119.)],
        [(116., 90.), (156., 198.), (373., 326.)],
    ]
    target_class = 3
    target_box = [10.0, 10.0, 50.0, 60.0]
    # metainfo scale_factor = (1.5, 1.5) -> scale_boxes multiplier is 1/s
    scale_factor = [1.0 / 1.5, 1.0 / 1.5]

    key = jax.random.PRNGKey(0)
    keys = jax.random.split(key, 3 * len(LEVEL_HW))
    feats, ws, bs = [], [], []
    for li, (h, w) in enumerate(LEVEL_HW):
        kf, kw, kb = keys[3 * li], keys[3 * li + 1], keys[3 * li + 2]
        feats.append(jax.random.normal(kf, (h * w, C_IN), jnp.float32))
        # TODO(synk): real checkpoints order conv output channels as
        #             anchor-major (a*num_attrib + attrib); the synthetic
        #             weights here follow the same convention.
        ws.append(0.1 * jax.random.normal(
            kw, (C_IN, NUM_ANCHORS * NUM_ATTRIB), jnp.float32))
        bs.append(0.1 * jax.random.normal(
            kb, (NUM_ANCHORS * NUM_ATTRIB,), jnp.float32))

    best = yolo_v3_r_forward(feats, ws, bs, LEVEL_HW, LEVEL_STRIDES,
                             BASE_SIZES, target_class, target_box,
                             scale_factor, NUM_ATTRIB, lane_tile=128)
    best = jax.block_until_ready(best)
    best_np = np.asarray(best)

    result = {
        "object_score": float(best_np[0]),
        "predict_box": [int(v) for v in best_np[3:7]],
        "predict_cls_score": float(best_np[2]),
        "iou": float(best_np[1]),
    }
    _ = result  # same fields as the PyTorch module's returned dict
    print("KERNEL_OK")
</pallas_src>

<mosaic_0001>
module attributes {stable_mosaic.version = 11 : i64} {
  func.func @fused_head_decode_kernel(%arg0: i32, %arg1: memref<3xi32, #tpu.memory_space<smem>>, %arg2: memref<3xi32, #tpu.memory_space<smem>>, %arg3: memref<3xi32, #tpu.memory_space<smem>>, %arg4: memref<3xf32, #tpu.memory_space<smem>>, %arg5: memref<3xf32, #tpu.memory_space<smem>>, %arg6: memref<5xf32, #tpu.memory_space<smem>>, %arg7: memref<32x128xbf16, #tpu.memory_space<vmem>>, %arg8: memref<1x16x32xbf16, #tpu.memory_space<vmem>>, %arg9: memref<1x16x1xf32, #tpu.memory_space<vmem>>, %arg10: memref<2x128xf32, #tpu.memory_space<vmem>>, %arg11: memref<1x1x128xf32, #tpu.memory_space<vmem>>) attributes {dimension_semantics = [#tpu.dimension_semantics<parallel>], iteration_bounds = array<i64: 3>, scalar_prefetch = 1 : i64, scratch_operands = 0 : i64, tpu.core_type = #tpu.core_type<tc>, window_params = [{transform_indices = @transform_0, window_bounds = array<i64: 3>}, {transform_indices = @transform_1, window_bounds = array<i64: 3>}, {transform_indices = @transform_2, window_bounds = array<i64: 3>}, {transform_indices = @transform_3, window_bounds = array<i64: 3>}, {transform_indices = @transform_4, window_bounds = array<i64: 5>}, {transform_indices = @transform_5, window_bounds = array<i64: 32, 128>}, {transform_indices = @transform_6, window_bounds = array<i64: 1, 16, 32>}, {transform_indices = @transform_7, window_bounds = array<i64: 1, 16, 1>}, {transform_indices = @transform_8, window_bounds = array<i64: 2, 128>}, {transform_indices = @transform_9, window_bounds = array<i64: 1, 1, 128>}]} {
    %0 = arith.index_cast %arg0 : i32 to index
    %1 = memref.load %arg2[%0] : memref<3xi32, #tpu.memory_space<smem>>
    %2 = arith.index_cast %arg0 : i32 to index
    %3 = memref.load %arg3[%2] : memref<3xi32, #tpu.memory_space<smem>>
    %4 = arith.index_cast %arg0 : i32 to index
    %5 = memref.load %arg4[%4] : memref<3xf32, #tpu.memory_space<smem>>
    %6 = arith.index_cast %arg0 : i32 to index
    %7 = memref.load %arg5[%6] : memref<3xf32, #tpu.memory_space<smem>>
    %c0 = arith.constant 0 : index
    %8 = memref.load %arg6[%c0] : memref<5xf32, #tpu.memory_space<smem>>
    %c1 = arith.constant 1 : index
    %9 = memref.load %arg6[%c1] : memref<5xf32, #tpu.memory_space<smem>>
    %c2 = arith.constant 2 : index
    %10 = memref.load %arg6[%c2] : memref<5xf32, #tpu.memory_space<smem>>
    %c3 = arith.constant 3 : index
    %11 = memref.load %arg6[%c3] : memref<5xf32, #tpu.memory_space<smem>>
    %c4 = arith.constant 4 : index
    %12 = memref.load %arg6[%c4] : memref<5xf32, #tpu.memory_space<smem>>
    %c0_0 = arith.constant 0 : index
    %c0_1 = arith.constant 0 : index
    %c0_2 = arith.constant 0 : index
    %13 = vector.load %arg8[%c0_0, %c0_1, %c0_2] : memref<1x16x32xbf16, #tpu.memory_space<vmem>>, vector<1x16x32xbf16>
    %14 = vector.shape_cast %13 : vector<1x16x32xbf16> to vector<16x32xbf16>
    %c0_3 = arith.constant 0 : index
    %c0_4 = arith.constant 0 : index
    %15 = vector.load %arg7[%c0_3, %c0_4] : memref<32x128xbf16, #tpu.memory_space<vmem>>, vector<32x128xbf16>
    %cst = arith.constant dense<0.000000e+00> : vector<16x128xf32>
    %16 = tpu.matmul %14, %15, %cst {dimension_numbers = #tpu.dot_dimension_numbers<[1], [0], [0], [1], [0, 0, 1, 1], [], []>} : vector<16x32xbf16>, vector<32x128xbf16>, vector<16x128xf32> -> vector<16x128xf32>
    %c0_5 = arith.constant 0 : index
    %c0_6 = arith.constant 0 : index
    %c0_7 = arith.constant 0 : index
    %17 = vector.load %arg9[%c0_5, %c0_6, %c0_7] : memref<1x16x1xf32, #tpu.memory_space<vmem>>, vector<1x16x1xf32>
    %18 = vector.shape_cast %17 : vector<1x16x1xf32> to vector<16x1xf32>
    %19 = vector.broadcast %18 : vector<16x1xf32> to vector<16x128xf32>
    %20 = arith.addf %16, %19 : vector<16x128xf32>
    %21 = vector.extract_strided_slice %20 {offsets = [0, 0], sizes = [9, 128], strides = [1, 1]} : vector<16x128xf32> to vector<9x128xf32>
    %22 = arith.negf %21 : vector<9x128xf32>
    %23 = math.exp %22 : vector<9x128xf32>
    %cst_8 = arith.constant 1.000000e+00 : f32
    %24 = vector.broadcast %cst_8 : f32 to vector<9x128xf32>
    %25 = arith.addf %24, %23 : vector<9x128xf32>
    %26 = arith.divf %24, %25 : vector<9x128xf32>
    %27 = vector.extract_strided_slice %26 {offsets = [0, 0], sizes = [6, 128], strides = [1, 1]} : vector<9x128xf32> to vector<6x128xf32>
    %28 = vector.extract_strided_slice %26 {offsets = [6, 0], sizes = [3, 128], strides = [1, 1]} : vector<9x128xf32> to vector<3x128xf32>
    %29 = vector.extract_strided_slice %20 {offsets = [9, 0], sizes = [6, 128], strides = [1, 1]} : vector<16x128xf32> to vector<6x128xf32>
    %30 = math.exp %29 : vector<6x128xf32>
    %31 = tpu.iota {dimensions = array<i32: 0>} : vector<6x1xi32>
    %c3_i32 = arith.constant 3 : i32
    %32 = vector.broadcast %c3_i32 : i32 to vector<6x1xi32>
    %33 = arith.cmpi slt, %31, %32 : vector<6x1xi32>
    %34 = vector.broadcast %5 : f32 to vector<6x1xf32>
    %35 = vector.broadcast %7 : f32 to vector<6x1xf32>
    %36 = arith.select %33, %34, %35 : vector<6x1xi1>, vector<6x1xf32>
    %37 = vector.broadcast %8 : f32 to vector<6x1xf32>
    %38 = vector.broadcast %9 : f32 to vector<6x1xf32>
    %39 = arith.select %33, %37, %38 : vector<6x1xi1>, vector<6x1xf32>
    %40 = vector.broadcast %10 : f32 to vector<6x1xf32>
    %41 = vector.broadcast %11 : f32 to vector<6x1xf32>
    %42 = arith.select %33, %40, %41 : vector<6x1xi1>, vector<6x1xf32>
    %c0_9 = arith.constant 0 : index
    %c0_10 = arith.constant 0 : index
    %43 = vector.load %arg10[%c0_9, %c0_10] : memref<2x128xf32, #tpu.memory_space<vmem>>, vector<1x128xf32>
    %44 = vector.shape_cast %43 : vector<1x128xf32> to vector<1x128xf32>
    %45 = vector.broadcast %44 : vector<1x128xf32> to vector<3x128xf32>
    %c1_11 = arith.constant 1 : index
    %c0_12 = arith.constant 0 : index
    %46 = vector.load %arg10[%c1_11, %c0_12] : memref<2x128xf32, #tpu.memory_space<vmem>>, vector<1x128xf32>
    %47 = vector.shape_cast %46 : vector<1x128xf32> to vector<1x128xf32>
    %48 = vector.broadcast %47 : vector<1x128xf32> to vector<3x128xf32>
    %49 = tpu.concatenate %45, %48 in 0 : vector<3x128xf32>, vector<3x128xf32> -> vector<6x128xf32>
    %cst_13 = arith.constant 5.000000e-01 : f32
    %50 = vector.broadcast %cst_13 : f32 to vector<6x128xf32>
    %51 = arith.subf %27, %50 : vector<6x128xf32>
    %52 = vector.broadcast %36 : vector<6x1xf32> to vector<6x128xf32>
    %53 = arith.mulf %51, %52 : vector<6x128xf32>
    %54 = arith.addf %49, %53 : vector<6x128xf32>
    %55 = arith.subf %54, %30 : vector<6x128xf32>
    %56 = arith.addf %54, %30 : vector<6x128xf32>
    %57 = vector.broadcast %39 : vector<6x1xf32> to vector<6x128xf32>
    %58 = arith.maximumf %55, %57 : vector<6x128xf32>
    %59 = vector.broadcast %42 : vector<6x1xf32> to vector<6x128xf32>
    %60 = arith.minimumf %56, %59 : vector<6x128xf32>
    %61 = arith.subf %60, %58 : vector<6x128xf32>
    %cst_14 = arith.constant 0.000000e+00 : f32
    %62 = vector.broadcast %cst_14 : f32 to vector<6x128xf32>
    %63 = arith.maximumf %61, %62 : vector<6x128xf32>
    %64 = vector.extract_strided_slice %63 {offsets = [0, 0], sizes = [3, 128], strides = [1, 1]} : vector<6x128xf32> to vector<3x128xf32>
    %65 = vector.extract_strided_slice %63 {offsets = [3, 0], sizes = [3, 128], strides = [1, 1]} : vector<6x128xf32> to vector<3x128xf32>
    %66 = arith.mulf %64, %65 : vector<3x128xf32>
    %67 = vector.extract_strided_slice %30 {offsets = [0, 0], sizes = [3, 128], strides = [1, 1]} : vector<6x128xf32> to vector<3x128xf32>
    %cst_15 = arith.constant 4.000000e+00 : f32
    %68 = vector.broadcast %cst_15 : f32 to vector<3x128xf32>
    %69 = arith.mulf %68, %67 : vector<3x128xf32>
    %70 = vector.extract_strided_slice %30 {offsets = [3, 0], sizes = [3, 128], strides = [1, 1]} : vector<6x128xf32> to vector<3x128xf32>
    %71 = arith.mulf %69, %70 : vector<3x128xf32>
    %72 = vector.broadcast %12 : f32 to vector<3x128xf32>
    %73 = arith.addf %71, %72 : vector<3x128xf32>
    %74 = arith.subf %73, %66 : vector<3x128xf32>
    %75 = arith.divf %66, %74 : vector<3x128xf32>
    %76 = tpu.iota {dimensions = array<i32: 1>} : vector<3x128xi32>
    %77 = tpu.iota {dimensions = array<i32: 0>} : vector<3x128xi32>
    %78 = vector.broadcast %1 : i32 to vector<3x128xi32>
    %79 = arith.cmpi slt, %76, %78 : vector<3x128xi32>
    %80 = arith.mulf %75, %28 : vector<3x128xf32>
    %cst_16 = arith.constant 0xFF800000 : f32
    %81 = vector.broadcast %cst_16 : f32 to vector<3x128xf32>
    %82 = arith.select %79, %80, %81 : vector<3x128xi1>, vector<3x128xf32>
    %c3_i32_17 = arith.constant 3 : i32
    %83 = vector.broadcast %c3_i32_17 : i32 to vector<3x128xi32>
    %84 = arith.muli %76, %83 : vector<3x128xi32>
    %85 = vector.broadcast %3 : i32 to vector<3x128xi32>
    %86 = arith.addi %85, %84 : vector<3x128xi32>
    %87 = arith.addi %86, %77 : vector<3x128xi32>
    %cst_18 = arith.constant dense<0xFF800000> : vector<3xf32>
    %88 = vector.multi_reduction <maximumf>, %82, %cst_18 [1] : vector<3x128xf32> to vector<3xf32>
    %89 = vector.shape_cast %88 : vector<3xf32> to vector<3x1xf32>
    %cst_19 = arith.constant dense<0xFF800000> : vector<1xf32>
    %90 = vector.multi_reduction <maximumf>, %89, %cst_19 [0] : vector<3x1xf32> to vector<1xf32>
    %91 = vector.shape_cast %90 : vector<1xf32> to vector<1x1xf32>
    %92 = vector.broadcast %91 : vector<1x1xf32> to vector<3x128xf32>
    %93 = arith.cmpf oeq, %82, %92 : vector<3x128xf32>
    %c1073741824_i32 = arith.constant 1073741824 : i32
    %94 = vector.broadcast %c1073741824_i32 : i32 to vector<3x128xi32>
    %95 = arith.select %93, %87, %94 : vector<3x128xi1>, vector<3x128xi32>
    %cst_20 = arith.constant dense<2147483647> : vector<3xi32>
    %96 = vector.multi_reduction <minsi>, %95, %cst_20 [1] : vector<3x128xi32> to vector<3xi32>
    %97 = vector.shape_cast %96 : vector<3xi32> to vector<3x1xi32>
    %cst_21 = arith.constant dense<2147483647> : vector<1xi32>
    %98 = vector.multi_reduction <minsi>, %97, %cst_21 [0] : vector<3x1xi32> to vector<1xi32>
    %99 = vector.shape_cast %98 : vector<1xi32> to vector<1x1xi32>
    %100 = vector.broadcast %99 : vector<1x1xi32> to vector<3x128xi32>
    %101 = arith.cmpi eq, %87, %100 : vector<3x128xi32>
    %102 = vector.extract_strided_slice %55 {offsets = [0, 0], sizes = [3, 128], strides = [1, 1]} : vector<6x128xf32> to vector<3x128xf32>
    %103 = vector.extract_strided_slice %55 {offsets = [3, 0], sizes = [3, 128], strides = [1, 1]} : vector<6x128xf32> to vector<3x128xf32>
    %104 = vector.extract_strided_slice %56 {offsets = [0, 0], sizes = [3, 128], strides = [1, 1]} : vector<6x128xf32> to vector<3x128xf32>
    %105 = vector.extract_strided_slice %56 {offsets = [3, 0], sizes = [3, 128], strides = [1, 1]} : vector<6x128xf32> to vector<3x128xf32>
    %cst_22 = arith.constant 0.000000e+00 : f32
    %106 = vector.broadcast %cst_22 : f32 to vector<3x128xf32>
    %107 = arith.select %101, %75, %106 : vector<3x128xi1>, vector<3x128xf32>
    %cst_23 = arith.constant dense<0.000000e+00> : vector<3xf32>
    %108 = vector.multi_reduction <add>, %107, %cst_23 [1] : vector<3x128xf32> to vector<3xf32>
    %109 = vector.shape_cast %108 : vector<3xf32> to vector<3x1xf32>
    %cst_24 = arith.constant dense<0.000000e+00> : vector<1xf32>
    %110 = vector.multi_reduction <add>, %109, %cst_24 [0] : vector<3x1xf32> to vector<1xf32>
    %111 = vector.shape_cast %110 : vector<1xf32> to vector<1x1xf32>
    %cst_25 = arith.constant 0.000000e+00 : f32
    %112 = vector.broadcast %cst_25 : f32 to vector<3x128xf32>
    %113 = arith.select %101, %28, %112 : vector<3x128xi1>, vector<3x128xf32>
    %cst_26 = arith.constant dense<0.000000e+00> : vector<3xf32>
    %114 = vector.multi_reduction <add>, %113, %cst_26 [1] : vector<3x128xf32> to vector<3xf32>
    %115 = vector.shape_cast %114 : vector<3xf32> to vector<3x1xf32>
    %cst_27 = arith.constant dense<0.000000e+00> : vector<1xf32>
    %116 = vector.multi_reduction <add>, %115, %cst_27 [0] : vector<3x1xf32> to vector<1xf32>
    %117 = vector.shape_cast %116 : vector<1xf32> to vector<1x1xf32>
    %cst_28 = arith.constant 0.000000e+00 : f32
    %118 = vector.broadcast %cst_28 : f32 to vector<3x128xf32>
    %119 = arith.select %101, %102, %118 : vector<3x128xi1>, vector<3x128xf32>
    %cst_29 = arith.constant dense<0.000000e+00> : vector<3xf32>
    %120 = vector.multi_reduction <add>, %119, %cst_29 [1] : vector<3x128xf32> to vector<3xf32>
    %121 = vector.shape_cast %120 : vector<3xf32> to vector<3x1xf32>
    %cst_30 = arith.constant dense<0.000000e+00> : vector<1xf32>
    %122 = vector.multi_reduction <add>, %121, %cst_30 [0] : vector<3x1xf32> to vector<1xf32>
    %123 = vector.shape_cast %122 : vector<1xf32> to vector<1x1xf32>
    %cst_31 = arith.constant 0.000000e+00 : f32
    %124 = vector.broadcast %cst_31 : f32 to vector<3x128xf32>
    %125 = arith.select %101, %103, %124 : vector<3x128xi1>, vector<3x128xf32>
    %cst_32 = arith.constant dense<0.000000e+00> : vector<3xf32>
    %126 = vector.multi_reduction <add>, %125, %cst_32 [1] : vector<3x128xf32> to vector<3xf32>
    %127 = vector.shape_cast %126 : vector<3xf32> to vector<3x1xf32>
    %cst_33 = arith.constant dense<0.000000e+00> : vector<1xf32>
    %128 = vector.multi_reduction <add>, %127, %cst_33 [0] : vector<3x1xf32> to vector<1xf32>
    %129 = vector.shape_cast %128 : vector<1xf32> to vector<1x1xf32>
    %cst_34 = arith.constant 0.000000e+00 : f32
    %130 = vector.broadcast %cst_34 : f32 to vector<3x128xf32>
    %131 = arith.select %101, %104, %130 : vector<3x128xi1>, vector<3x128xf32>
    %cst_35 = arith.constant dense<0.000000e+00> : vector<3xf32>
    %132 = vector.multi_reduction <add>, %131, %cst_35 [1] : vector<3x128xf32> to vector<3xf32>
    %133 = vector.shape_cast %132 : vector<3xf32> to vector<3x1xf32>
    %cst_36 = arith.constant dense<0.000000e+00> : vector<1xf32>
    %134 = vector.multi_reduction <add>, %133, %cst_36 [0] : vector<3x1xf32> to vector<1xf32>
    %135 = vector.shape_cast %134 : vector<1xf32> to vector<1x1xf32>
    %cst_37 = arith.constant 0.000000e+00 : f32
    %136 = vector.broadcast %cst_37 : f32 to vector<3x128xf32>
    %137 = arith.select %101, %105, %136 : vector<3x128xi1>, vector<3x128xf32>
    %cst_38 = arith.constant dense<0.000000e+00> : vector<3xf32>
    %138 = vector.multi_reduction <add>, %137, %cst_38 [1] : vector<3x128xf32> to vector<3xf32>
    %139 = vector.shape_cast %138 : vector<3xf32> to vector<3x1xf32>
    %cst_39 = arith.constant dense<0.000000e+00> : vector<1xf32>
    %140 = vector.multi_reduction <add>, %139, %cst_39 [0] : vector<3x1xf32> to vector<1xf32>
    %141 = vector.shape_cast %140 : vector<1xf32> to vector<1x1xf32>
    %142 = arith.sitofp %99 : vector<1x1xi32> to vector<1x1xf32>
    %cst_40 = arith.constant 0.000000e+00 : f32
    %143 = vector.broadcast %cst_40 : f32 to vector<1x120xf32>
    %144 = tpu.concatenate %91, %111, %117, %123, %129, %135, %141, %142, %143 in 1 : vector<1x1xf32>, vector<1x1xf32>, vector<1x1xf32>, vector<1x1xf32>, vector<1x1xf32>, vector<1x1xf32>, vector<1x1xf32>, vector<1x1xf32>, vector<1x120xf32> -> vector<1x128xf32>
    %c0_41 = arith.constant 0 : index
    %c0_42 = arith.constant 0 : index
    %c0_43 = arith.constant 0 : index
    %145 = vector.load %arg11[%c0_41, %c0_42, %c0_43] : memref<1x1x128xf32, #tpu.memory_space<vmem>>, vector<1x1x128xf32>
    %146 = vector.shape_cast %145 : vector<1x1x128xf32> to vector<1x128xf32>
    %147 = vector.shape_cast %144 : vector<1x128xf32> to vector<1x1x128xf32>
    tpu.vector_store %arg11[%c0_41, %c0_42, %c0_43], %147 {strides = array<i32>} : memref<1x1x128xf32, #tpu.memory_space<vmem>>, vector<1x1x128xf32>,
    return
  }
  func.func @transform_0(%arg0: i32, %arg1: memref<3xi32, #tpu.memory_space<smem>>) -> i32 {
    %c0_i32 = arith.constant 0 : i32
    %c0_i32_0 = arith.constant 0 : i32
    return %c0_i32 : i32
  }
  func.func @transform_1(%arg0: i32, %arg1: memref<3xi32, #tpu.memory_space<smem>>) -> i32 {
    %c0_i32 = arith.constant 0 : i32
    %c0_i32_0 = arith.constant 0 : i32
    return %c0_i32 : i32
  }
  func.func @transform_2(%arg0: i32, %arg1: memref<3xi32, #tpu.memory_space<smem>>) -> i32 {
    %c0_i32 = arith.constant 0 : i32
    %c0_i32_0 = arith.constant 0 : i32
    return %c0_i32 : i32
  }
  func.func @transform_3(%arg0: i32, %arg1: memref<3xi32, #tpu.memory_space<smem>>) -> i32 {
    %c0_i32 = arith.constant 0 : i32
    %c0_i32_0 = arith.constant 0 : i32
    return %c0_i32 : i32
  }
  func.func @transform_4(%arg0: i32, %arg1: memref<3xi32, #tpu.memory_space<smem>>) -> i32 {
    %c0_i32 = arith.constant 0 : i32
    %c0_i32_0 = arith.constant 0 : i32
    return %c0_i32 : i32
  }
  func.func @transform_5(%arg0: i32, %arg1: memref<3xi32, #tpu.memory_space<smem>>) -> (i32, i32) {
    %c0_i32 = arith.constant 0 : i32
    %c0_i32_0 = arith.constant 0 : i32
    return %c0_i32, %arg0 : i32, i32
  }
  func.func @transform_6(%arg0: i32, %arg1: memref<3xi32, #tpu.memory_space<smem>>) -> (i32, i32, i32) {
    %0 = arith.index_cast %arg0 : i32 to index
    %1 = memref.load %arg1[%0] : memref<3xi32, #tpu.memory_space<smem>>
    %c0_i32 = arith.constant 0 : i32
    %c0_i32_0 = arith.constant 0 : i32
    %c0_i32_1 = arith.constant 0 : i32
    return %1, %c0_i32, %c0_i32_0 : i32, i32, i32
  }
  func.func @transform_7(%arg0: i32, %arg1: memref<3xi32, #tpu.memory_space<smem>>) -> (i32, i32, i32) {
    %0 = arith.index_cast %arg0 : i32 to index
    %1 = memref.load %arg1[%0] : memref<3xi32, #tpu.memory_space<smem>>
    %c0_i32 = arith.constant 0 : i32
    %c0_i32_0 = arith.constant 0 : i32
    %c0_i32_1 = arith.constant 0 : i32
    return %1, %c0_i32, %c0_i32_0 : i32, i32, i32
  }
  func.func @transform_8(%arg0: i32, %arg1: memref<3xi32, #tpu.memory_space<smem>>) -> (i32, i32) {
    %c0_i32 = arith.constant 0 : i32
    %c0_i32_0 = arith.constant 0 : i32
    return %c0_i32, %arg0 : i32, i32
  }
  func.func @transform_9(%arg0: i32, %arg1: memref<3xi32, #tpu.memory_space<smem>>) -> (i32, i32, i32) {
    %c0_i32 = arith.constant 0 : i32
    %c0_i32_0 = arith.constant 0 : i32
    %c0_i32_1 = arith.constant 0 : i32
    return %arg0, %c0_i32, %c0_i32_0 : i32, i32, i32
  }
}

</mosaic_0001>

<llo_original>
// kernel: tpu_custom_call.1
$region0: #{tpu_custom_call.1}
  #allocation0 [shape = 'u32[]', space=smem, size = 0x4, offset = 0x4, fixed_abs, tag = 'smem constant byte address 0x4 - core index']
  #allocation1 [shape = 'u32[72,128]{1,0:T(1,128)}', space=vmem, size = 0x9000, scoped, tag = 'internal scratch']
  #allocation2 [shape = 's32[1]{0}', space=sflag, size = 0x4, scoped, tag = 'scoped memory for tpu_custom_call.1']
  #allocation3 [shape = 'u8[512]{0}', space=smem, size = 0x200, scoped, tag = 'prefetched SMEM operand 0']
  %s0 = inlined_call_operand.vmem [shape: s32[3], index: 0, kind: input, shape index: {}]
  %s1 = inlined_call_operand.vmem [shape: s32[3], index: 1, kind: input, shape index: {}]
  %s2 = inlined_call_operand.vmem [shape: s32[3], index: 2, kind: input, shape index: {}]
  %s3 = inlined_call_operand.vmem [shape: f32[3], index: 3, kind: input, shape index: {}]
  %s4 = inlined_call_operand.vmem [shape: f32[3], index: 4, kind: input, shape index: {}]
  %s5 = inlined_call_operand.hbm [shape: f32[5], index: 5, kind: input, shape index: {}]
  %s6 = inlined_call_operand.vmem [shape: bf16[32,384], index: 6, kind: input, shape index: {}]
  %s7 = inlined_call_operand.hbm [shape: bf16[3,16,32], index: 7, kind: input, shape index: {}]
  %s8 = inlined_call_operand.vmem [shape: f32[3,16,1], index: 8, kind: input, shape index: {}]
  %s9 = inlined_call_operand.hbm [shape: f32[2,384], index: 9, kind: input, shape index: {}]
  %s10 = inlined_call_operand.hbm [shape: f32[3,1,128], index: 10, kind: output, shape index: {}]
  %s11 = sld [smem:[#allocation0]]
  $region138: #{tpu_custom_call.1} parent=0
    _
  %s13 = ssub.s32 1, %s11
  %s14 = scalar_select 0, %s13, %s11
  %s16 = sshll.u32 %s0, 4
  %s17 = int_to_ptr.vmem [resolvable:$true] %s16
  %19 = dma.vmem_to_smem %s17, 16, [#allocation3], [#allocation2]
  %21 = dma.done [#allocation2], 16
  %22 = sfence
  $region1: #{tpu_custom_call.1} parent=0
    #allocation4 [shape = 'u8[512]{0}', space=smem, size = 0x200, scoped, tag = 'input window, operand 1, single buffered']
    #allocation5 [shape = 's32[2]{0}', space=sflag, size = 0x8, scoped, tag = 'scoped memory for tpu_custom_call.1']
    #allocation6 [shape = 's32[2]{0}', space=sflag, size = 0x8, scoped, tag = 'scoped memory for tpu_custom_call.1']
    #allocation7 [shape = 's32[2]{0}', space=sflag, size = 0x8, scoped, tag = 'scoped memory for tpu_custom_call.1']
    #allocation8 [shape = 's32[2]{0}', space=sflag, size = 0x8, scoped, tag = 'scoped memory for tpu_custom_call.1']
    #allocation9 [shape = 'u8[512]{0}', space=smem, size = 0x200, scoped, tag = 'input window, operand 2, single buffered']
    #allocation10 [shape = 's32[1]{0}', space=sflag, size = 0x4, scoped, tag = 'scoped memory for tpu_custom_call.1']
    #allocation11 [shape = 'u8[512]{0}', space=smem, size = 0x200, scoped, tag = 'input window, operand 3, single buffered']
    #allocation12 [shape = 'u8[512]{0}', space=smem, size = 0x200, scoped, tag = 'input window, operand 4, single buffered']
    #allocation13 [shape = 's32[1]{0}', space=sflag, size = 0x4, scoped, tag = 'scoped memory for tpu_custom_call.1']
    #allocation14 [shape = 'u8[512]{0}', space=smem, size = 0x200, scoped, tag = 'input window, operand 5, single buffered']
    #allocation15 [shape = 'u8[16384]{0}', space=vmem, size = 0x4000, scoped, tag = 'input window, operand 6']
    #allocation16 [shape = 'u8[8192]{0}', space=vmem, size = 0x2000, scoped, tag = 'input window, operand 7']
    #allocation17 [shape = 'u8[2048]{0}', space=vmem, size = 0x800, scoped, tag = 'input window, operand 9']
    #allocation18 [shape = 's32[2]{0}', space=sflag, size = 0x8, scoped, tag = 'scoped memory for tpu_custom_call.1']
    #allocation19 [shape = 'u8[1024]{0}', space=vmem, size = 0x400, scoped, tag = 'output window, operand 0']
    %23 = vsyncpa [#allocation8], 0
    %24 = vsyncpa [#allocation10], 0
    %25 = vsyncpa [#allocation13], 0
    %26 = vsyncpa [#allocation7], 0
    %27 = vsyncpa [#allocation5], 0
    %s28 = scalar_lea.sflag [#allocation5], 1
    %29 = vsyncpa %s28, 0
    %30 = vsyncpa [#allocation18], 0
    %s31 = scalar_lea.sflag [#allocation18], 1
    %32 = vsyncpa %s31, 0
    %33 = vsyncpa [#allocation6], 0
    %s34 = scalar_lea.sflag [#allocation6], 1
    %35 = vsyncpa %s34, 0
    loop: start=0, step=1, limit=5
    $region2: #{tpu_custom_call.1} parent=1 // loop_pre_header
      _
    $region3: #{tpu_custom_call.1} parent=1 // loop_header
      %s37 = sphi 0, %s41
      %p38 = scmp.ge.s32.totalorder %s37, 5
      %s45 = sphi 0, %s45
      %s47 = sphi 0, %s45
      %s48 = sphi 0, %s47
      %s62 = sphi 0, %s48
      %s66 = sphi 0, %s66
      %s68 = sphi 0, %s66
      %s69 = sphi 0, %s68
      %s83 = sphi 0, %s69
      %s87 = sphi 0, %s87
      %s89 = sphi 0, %s87
      %s90 = sphi 0, %s89
      %s104 = sphi 0, %s90
      %s108 = sphi 0, %s108
      %s110 = sphi 0, %s108
      %s111 = sphi 0, %s110
      %s125 = sphi 0, %s111
      %s129 = sphi 0, %s129
      %s131 = sphi 0, %s129
      %s132 = sphi 0, %s131
      %s146 = sphi 0, %s132
      %s152 = sphi 0, %s154
      %s155 = sphi 0, %s152
      %s156 = sphi 0, %s155
      %s172 = sphi 0, %s156
      %s180 = sphi 0, %s182
      %s183 = sphi 0, %s180
      %s184 = sphi 0, %s183
      %s200 = sphi 0, %s184
      %s208 = sphi 0, %s210
      %s211 = sphi 0, %s208
      %s212 = sphi 0, %s211
      %s228 = sphi 0, %s212
      %s234 = sphi 0, %s236
      %s237 = sphi 0, %s234
      %s238 = sphi 0, %s237
      %s254 = sphi 0, %s238
      %s260 = sphi 0, %s262
      %s263 = sphi 0, %s260
      %s264 = sphi 0, %s263
      %s280 = sphi 0, %s264
    $region4: #{tpu_custom_call.1} parent=1 // loop_header_branch
      %40 = sbr.rel (%p38) target = $region8
    $region5: #{tpu_custom_call.1} parent=1 // loop_body
      %s42 = ssub.s32 %s37, 1
      %s43 = ssub.s32 %s37, 2
      %s44 = sadd.s32 %s37, 1
      %s46 = sadd.s32 %s45, 1
      %p49 = scmp.eq.s32.totalorder %s37, 2
      %p50 = scmp.ne.s32.totalorder %s45, %s47
      %p51 = scmp.eq.s32.totalorder %s37, 0
      %p52 = por %p50, %p51
      %p53 = scmp.ne.s32.totalorder %s45, %s47
      %p54 = scmp.eq.s32.totalorder %s42, 2
      %p55 = por %p53, %p54
      %p56 = scmp.ne.s32.totalorder %s47, %s48
      %p57 = scmp.eq.s32.totalorder %s42, 0
      %p58 = por %p56, %p57
      %p59 = scmp.ne.s32.totalorder %s47, %s48
      %p60 = scmp.eq.s32.totalorder %s43, 2
      %p61 = por %p59, %p60
      %p63 = scmp.ne.s32.totalorder %s48, %s62
      %p64 = scmp.eq.s32.totalorder %s43, 0
      %p65 = por %p63, %p64
      %s67 = sadd.s32 %s66, 1
      %p70 = scmp.eq.s32.totalorder %s37, 2
      %p71 = scmp.ne.s32.totalorder %s66, %s68
      %p72 = scmp.eq.s32.totalorder %s37, 0
      %p73 = por %p71, %p72
      %p74 = scmp.ne.s32.totalorder %s66, %s68
      %p75 = scmp.eq.s32.totalorder %s42, 2
      %p76 = por %p74, %p75
      %p77 = scmp.ne.s32.totalorder %s68, %s69
      %p78 = scmp.eq.s32.totalorder %s42, 0
      %p79 = por %p77, %p78
      %p80 = scmp.ne.s32.totalorder %s68, %s69
      %p81 = scmp.eq.s32.totalorder %s43, 2
      %p82 = por %p80, %p81
      %p84 = scmp.ne.s32.totalorder %s69, %s83
      %p85 = scmp.eq.s32.totalorder %s43, 0
      %p86 = por %p84, %p85
      %s88 = sadd.s32 %s87, 1
      %p91 = scmp.eq.s32.totalorder %s37, 2
      %p92 = scmp.ne.s32.totalorder %s87, %s89
      %p93 = scmp.eq.s32.totalorder %s37, 0
      %p94 = por %p92, %p93
      %p95 = scmp.ne.s32.totalorder %s87, %s89
      %p96 = scmp.eq.s32.totalorder %s42, 2
      %p97 = por %p95, %p96
      %p98 = scmp.ne.s32.totalorder %s89, %s90
      %p99 = scmp.eq.s32.totalorder %s42, 0
      %p100 = por %p98, %p99
      %p101 = scmp.ne.s32.totalorder %s89, %s90
      %p102 = scmp.eq.s32.totalorder %s43, 2
      %p103 = por %p101, %p102
      %p105 = scmp.ne.s32.totalorder %s90, %s104
      %p106 = scmp.eq.s32.totalorder %s43, 0
      %p107 = por %p105, %p106
      %s109 = sadd.s32 %s108, 1
      %p112 = scmp.eq.s32.totalorder %s37, 2
      %p113 = scmp.ne.s32.totalorder %s108, %s110
      %p114 = scmp.eq.s32.totalorder %s37, 0
      %p115 = por %p113, %p114
      %p116 = scmp.ne.s32.totalorder %s108, %s110
      %p117 = scmp.eq.s32.totalorder %s42, 2
      %p118 = por %p116, %p117
      %p119 = scmp.ne.s32.totalorder %s110, %s111
      %p120 = scmp.eq.s32.totalorder %s42, 0
      %p121 = por %p119, %p120
      %p122 = scmp.ne.s32.totalorder %s110, %s111
      %p123 = scmp.eq.s32.totalorder %s43, 2
      %p124 = por %p122, %p123
      %p126 = scmp.ne.s32.totalorder %s111, %s125
      %p127 = scmp.eq.s32.totalorder %s43, 0
      %p128 = por %p126, %p127
      %s130 = sadd.s32 %s129, 1
      %p133 = scmp.eq.s32.totalorder %s37, 2
      %p134 = scmp.ne.s32.totalorder %s129, %s131
      %p135 = scmp.eq.s32.totalorder %s37, 0
      %p136 = por %p134, %p135
      %p137 = scmp.ne.s32.totalorder %s129, %s131
      %p138 = scmp.eq.s32.totalorder %s42, 2
      %p139 = por %p137, %p138
      %p140 = scmp.ne.s32.totalorder %s131, %s132
      %p141 = scmp.eq.s32.totalorder %s42, 0
      %p142 = por %p140, %p141
      %p143 = scmp.ne.s32.totalorder %s131, %s132
      %p144 = scmp.eq.s32.totalorder %s43, 2
      %p145 = por %p143, %p144
      %p147 = scmp.ne.s32.totalorder %s132, %s146
      %p148 = scmp.eq.s32.totalorder %s43, 0
      %p149 = por %p147, %p148
      %s150 = ssub.s32 %s37, %s44
      %p151 = scmp.eq.s32.totalorder %s150, 0
      %s153 = sadd.s32 %s152, 1
      %s154 = scalar_select %p151, %s152, %s153
      %p157 = pneg %p151
      %p158 = scmp.eq.s32.totalorder %s37, 2
      %p159 = por %p157, %p158
      %p160 = scmp.ne.s32.totalorder %s152, %s155
      %p161 = scmp.eq.s32.totalorder %s37, 0
      %p162 = por %p160, %p161
      %p163 = scmp.ne.s32.totalorder %s152, %s155
      %p164 = scmp.eq.s32.totalorder %s42, 2
      %p165 = por %p163, %p164
      %p166 = scmp.ne.s32.totalorder %s155, %s156
      %p167 = scmp.eq.s32.totalorder %s42, 0
      %p168 = por %p166, %p167
      %p169 = scmp.ne.s32.totalorder %s155, %s156
      %p170 = scmp.eq.s32.totalorder %s43, 2
      %p171 = por %p169, %p170
      %p173 = scmp.ne.s32.totalorder %s156, %s172
      %p174 = scmp.eq.s32.totalorder %s43, 0
      %p175 = por %p173, %p174
      %s176 = sld [smem:[#allocation3 + %s37]]
      %s177 = sld [smem:[#allocation3 + %s44]]
      %s178 = ssub.s32 %s176, %s177
      %p179 = scmp.eq.s32.totalorder %s178, 0
      %s181 = sadd.s32 %s180, 1
      %s182 = scalar_select %p179, %s180, %s181
      %p185 = pneg %p179
      %p186 = scmp.eq.s32.totalorder %s37, 2
      %p187 = por %p185, %p186
      %p188 = scmp.ne.s32.totalorder %s180, %s183
      %p189 = scmp.eq.s32.totalorder %s37, 0
      %p190 = por %p188, %p189
      %p191 = scmp.ne.s32.totalorder %s180, %s183
      %p192 = scmp.eq.s32.totalorder %s42, 2
      %p193 = por %p191, %p192
      %p194 = scmp.ne.s32.totalorder %s183, %s184
      %p195 = scmp.eq.s32.totalorder %s42, 0
      %p196 = por %p194, %p195
      %p197 = scmp.ne.s32.totalorder %s183, %s184
      %p198 = scmp.eq.s32.totalorder %s43, 2
      %p199 = por %p197, %p198
      %p201 = scmp.ne.s32.totalorder %s184, %s200
      %p202 = scmp.eq.s32.totalorder %s43, 0
      %p203 = por %p201, %p202
      %s204 = sld [smem:[#allocation3 + %s37]]
      %s205 = sld [smem:[#allocation3 + %s44]]
      %s206 = ssub.s32 %s204, %s205
      %p207 = scmp.eq.s32.totalorder %s206, 0
      %s209 = sadd.s32 %s208, 1
      %s210 = scalar_select %p207, %s208, %s209
      %p213 = pneg %p207
      %p214 = scmp.eq.s32.totalorder %s37, 2
      %p215 = por %p213, %p214
      %p216 = scmp.ne.s32.totalorder %s208, %s211
      %p217 = scmp.eq.s32.totalorder %s37, 0
      %p218 = por %p216, %p217
      %p219 = scmp.ne.s32.totalorder %s208, %s211
      %p220 = scmp.eq.s32.totalorder %s42, 2
      %p221 = por %p219, %p220
      %p222 = scmp.ne.s32.totalorder %s211, %s212
      %p223 = scmp.eq.s32.totalorder %s42, 0
      %p224 = por %p222, %p223
      %p225 = scmp.ne.s32.totalorder %s211, %s212
      %p226 = scmp.eq.s32.totalorder %s43, 2
      %p227 = por %p225, %p226
      %p229 = scmp.ne.s32.totalorder %s212, %s228
      %p230 = scmp.eq.s32.totalorder %s43, 0
      %p231 = por %p229, %p230
      %s232 = ssub.s32 %s37, %s44
      %p233 = scmp.eq.s32.totalorder %s232, 0
      %s235 = sadd.s32 %s234, 1
      %s236 = scalar_select %p233, %s234, %s235
      %p239 = pneg %p233
      %p240 = scmp.eq.s32.totalorder %s37, 2
      %p241 = por %p239, %p240
      %p242 = scmp.ne.s32.totalorder %s234, %s237
      %p243 = scmp.eq.s32.totalorder %s37, 0
      %p244 = por %p242, %p243
      %p245 = scmp.ne.s32.totalorder %s234, %s237
      %p246 = scmp.eq.s32.totalorder %s42, 2
      %p247 = por %p245, %p246
      %p248 = scmp.ne.s32.totalorder %s237, %s238
      %p249 = scmp.eq.s32.totalorder %s42, 0
      %p250 = por %p248, %p249
      %p251 = scmp.ne.s32.totalorder %s237, %s238
      %p252 = scmp.eq.s32.totalorder %s43, 2
      %p253 = por %p251, %p252
      %p255 = scmp.ne.s32.totalorder %s238, %s254
      %p256 = scmp.eq.s32.totalorder %s43, 0
      %p257 = por %p255, %p256
      %s258 = ssub.s32 %s37, %s44
      %p259 = scmp.eq.s32.totalorder %s258, 0
      %s261 = sadd.s32 %s260, 1
      %s262 = scalar_select %p259, %s260, %s261
      %p265 = pneg %p259
      %p266 = scmp.eq.s32.totalorder %s37, 2
      %p267 = por %p265, %p266
      %p268 = scmp.ne.s32.totalorder %s260, %s263
      %p269 = scmp.eq.s32.totalorder %s37, 0
      %p270 = por %p268, %p269
      %p271 = scmp.ne.s32.totalorder %s260, %s263
      %p272 = scmp.eq.s32.totalorder %s42, 2
      %p273 = por %p271, %p272
      %p274 = scmp.ne.s32.totalorder %s263, %s264
      %p275 = scmp.eq.s32.totalorder %s42, 0
      %p276 = por %p274, %p275
      %p277 = scmp.ne.s32.totalorder %s263, %s264
      %p278 = scmp.eq.s32.totalorder %s43, 2
      %p279 = por %p277, %p278
      %p281 = scmp.ne.s32.totalorder %s264, %s280
      %p282 = scmp.eq.s32.totalorder %s43, 0
      %p283 = por %p281, %p282
      %p284 = scmp.le.s32.totalorder 1, %s37
      %p285 = scmp.lt.s32.totalorder %s37, 4
      %p286 = pnand %p284, %p285
      %p287 = pneg %p286
      // Predicated region
      $region9: #{tpu_custom_call.1} parent=5 // pred_check
        _
      $region10: #{tpu_custom_call.1} parent=5 // pred_check_branch
        %289 = sbr.rel (%p286) target = $region12
      $region11: #{tpu_custom_call.1} parent=5 // pred_region
        %s290 = ssub.s32 %s37, 1
        // Predicated region
        $region13: #{tpu_custom_call.1} parent=11 // pred_check
          %p291 = pneg %p58
        $region14: #{tpu_custom_call.1} parent=11 // pred_check_branch
          %293 = sbr.rel (%p291) target = $region16
        $region15: #{tpu_custom_call.1} parent=11 // pred_region
          %295 = vsyncadd [#allocation8], 0
          %s297 = sshll.u32 %s1, 4
          %s298 = int_to_ptr.vmem [resolvable:$true] %s297
          %300 = dma.vmem_to_smem %s298, 16, [#allocation4], [#allocation8]
        $region16: #{tpu_custom_call.1} parent=11 // pred_fallthru
          _
        // Predicated region
        $region17: #{tpu_custom_call.1} parent=11 // pred_check
          %p301 = pneg %p79
        $region18: #{tpu_custom_call.1} parent=11 // pred_check_branch
          %303 = sbr.rel (%p301) target = $region20
        $region19: #{tpu_custom_call.1} parent=11 // pred_region
          %305 = vsyncadd [#allocation10], 0
          %s307 = sshll.u32 %s2, 4
          %s308 = int_to_ptr.vmem [resolvable:$true] %s307
          %310 = dma.vmem_to_smem %s308, 16, [#allocation9], [#allocation10]
        $region20: #{tpu_custom_call.1} parent=11 // pred_fallthru
          _
        // Predicated region
        $region21: #{tpu_custom_call.1} parent=11 // pred_check
          %p311 = pneg %p100
        $region22: #{tpu_custom_call.1} parent=11 // pred_check_branch
          %313 = sbr.rel (%p311) target = $region24
        $region23: #{tpu_custom_call.1} parent=11 // pred_region
          %315 = vsyncadd [#allocation10], 0
          %s317 = sshll.u32 %s3, 4
          %s318 = int_to_ptr.vmem [resolvable:$true] %s317
          %320 = dma.vmem_to_smem %s318, 16, [#allocation11], [#allocation10]
        $region24: #{tpu_custom_call.1} parent=11 // pred_fallthru
          _
        // Predicated region
        $region25: #{tpu_custom_call.1} parent=11 // pred_check
          %p321 = pneg %p121
        $region26: #{tpu_custom_call.1} parent=11 // pred_check_branch
          %323 = sbr.rel (%p321) target = $region28
        $region27: #{tpu_custom_call.1} parent=11 // pred_region
          %325 = vsyncadd [#allocation13], 0
          %s327 = sshll.u32 %s4, 4
          %s328 = int_to_ptr.vmem [resolvable:$true] %s327
          %330 = dma.vmem_to_smem %s328, 16, [#allocation12], [#allocation13]
        $region28: #{tpu_custom_call.1} parent=11 // pred_fallthru
          _
        // Predicated region
        $region29: #{tpu_custom_call.1} parent=11 // pred_check
          %p331 = pneg %p142
        $region30: #{tpu_custom_call.1} parent=11 // pred_check_branch
          %333 = sbr.rel (%p331) target = $region32
        $region31: #{tpu_custom_call.1} parent=11 // pred_region
          %335 = vsyncadd [#allocation7], 0
          %s337 = sshll.u32 %s5, 4
          %s338 = int_to_ptr.hbm [resolvable:$true] %s337
          %340 = dma.hbm_to_smem %s338, 16, [#allocation14], [#allocation7]
        $region32: #{tpu_custom_call.1} parent=11 // pred_fallthru
          _
      $region12: #{tpu_custom_call.1} parent=5 // pred_fallthru
        _
      %p341 = scmp.lt.s32.totalorder %s37, 3
      // Predicated region
      $region33: #{tpu_custom_call.1} parent=5 // pred_check
        %p342 = pneg %p341
      $region34: #{tpu_custom_call.1} parent=5 // pred_check_branch
        %344 = sbr.rel (%p342) target = $region36
      $region35: #{tpu_custom_call.1} parent=5 // pred_region
        // Predicated region
        $region37: #{tpu_custom_call.1} parent=35 // pred_check
          %p345 = pneg %p162
        $region38: #{tpu_custom_call.1} parent=35 // pred_check_branch
          %347 = sbr.rel (%p345) target = $region40
        $region39: #{tpu_custom_call.1} parent=35 // pred_region
          %s348 = sand.u32 %s152, 1
          %s349 = sand.u32 %s152, 1
          %s350 = smul.addr %s349, 16
          %s351 = scalar_lea.vmem [#allocation15], %s350
          %s352 = smul.addr %s37, 4
          %s353 = scalar_lea.vmem %s6, %s352
          // Predicated region
          $region41: #{tpu_custom_call.1} parent=39 // pred_check
            _
          $region42: #{tpu_custom_call.1} parent=39 // pred_check_branch
            %355 = sbr.rel (0) target = $region44
          $region43: #{tpu_custom_call.1} parent=39 // pred_region
            // Predicated region
            $region45: #{tpu_custom_call.1} parent=43 // pred_check
              _
            $region46: #{tpu_custom_call.1} parent=43 // pred_check_branch
              %357 = sbr.rel target = $region48
            $region47: #{tpu_custom_call.1} parent=43 // pred_region
              // Predicated region
              $region60: #{tpu_custom_call.1} parent=47 // pred_check
                _
              $region61: #{tpu_custom_call.1} parent=47 // pred_check_branch
                %379 = sbr.rel (0) target = $region63
              $region62: #{tpu_custom_call.1} parent=47 // pred_region
                loop: start=0, step=1, limit=1
                $region64: #{tpu_custom_call.1} parent=62 // loop_pre_header
                  _
                $region65: #{tpu_custom_call.1} parent=62 // loop_header
                  %s381 = sphi 0, %s385
                  %p382 = scmp.ge.s32.totalorder %s381, 1
                  %s386 = sphi %s353, %s353
                  %s387 = sphi %s351, %s351
                $region66: #{tpu_custom_call.1} parent=62 // loop_header_branch
                  %384 = sbr.rel (%p382) target = $region70
                $region67: #{tpu_custom_call.1} parent=62 // loop_body
                  _
                $region68: #{tpu_custom_call.1} parent=62 // loop_footer
                  %s385 = sadd.s32 1, %s381
                $region69: #{tpu_custom_call.1} parent=62 // loop_footer_branch
                  %380 = sbr.rel target = $region65
                $region70: #{tpu_custom_call.1} parent=62 // loop_exit
                  _
                %s389 = ssub.s32 16, 1
                loop: start=0, step=1, limit=1
                $region71: #{tpu_custom_call.1} parent=62 // loop_pre_header
                  _
                $region72: #{tpu_custom_call.1} parent=62 // loop_header
                  %s391 = sphi 0, %s395
                  %p392 = scmp.ge.s32.totalorder %s391, 1
                  %s396 = sphi %s353, %s353
                  %s397 = sphi %s351, %s351
                $region73: #{tpu_custom_call.1} parent=62 // loop_header_branch
                  %394 = sbr.rel (%p392) target = $region77
                $region74: #{tpu_custom_call.1} parent=62 // loop_body
                  %v398 = vld [vmem:[%s396] sm:%s389]
                  %399 = vst [vmem:[%s397] sm:%s389] %v398
                  %v400 = vld [vmem:[%s396 + $0xc] sm:%s389]
                  %401 = vst [vmem:[%s397 + $0x4] sm:%s389] %v400
                  %v402 = vld [vmem:[%s396 + $0x18] sm:%s389]
                  %403 = vst [vmem:[%s397 + $0x8] sm:%s389] %v402
                  %v404 = vld [vmem:[%s396 + $0x24] sm:%s389]
                  %405 = vst [vmem:[%s397 + $0xc] sm:%s389] %v404
                $region75: #{tpu_custom_call.1} parent=62 // loop_footer
                  %s395 = sadd.s32 1, %s391
                $region76: #{tpu_custom_call.1} parent=62 // loop_footer_branch
                  %390 = sbr.rel target = $region72
                $region77: #{tpu_custom_call.1} parent=62 // loop_exit
                  _
              $region63: #{tpu_custom_call.1} parent=47 // pred_fallthru
                _
            $region48: #{tpu_custom_call.1} parent=43 // pred_fallthru
              _
            // Predicated region
            $region49: #{tpu_custom_call.1} parent=43 // pred_check
              _
            $region50: #{tpu_custom_call.1} parent=43 // pred_check_branch
              %359 = sbr.rel (0) target = $region52
            $region51: #{tpu_custom_call.1} parent=43 // pred_region
              %s361 = ssub.s32 16, 1
              loop: start=0, step=1, limit=1
              $region53: #{tpu_custom_call.1} parent=51 // loop_pre_header
                _
              $region54: #{tpu_custom_call.1} parent=51 // loop_header
                %s363 = sphi 0, %s367
                %p364 = scmp.ge.s32.totalorder %s363, 1
                %s368 = sphi %s353, %s353
                %s369 = sphi %s351, %s351
              $region55: #{tpu_custom_call.1} parent=51 // loop_header_branch
                %366 = sbr.rel (%p364) target = $region59
              $region56: #{tpu_custom_call.1} parent=51 // loop_body
                %v370 = vld [vmem:[%s368] sm:%s361]
                %371 = vst [vmem:[%s369] sm:%s361] %v370
                %v372 = vld [vmem:[%s368 + $0xc] sm:%s361]
                %373 = vst [vmem:[%s369 + $0x4] sm:%s361] %v372
                %v374 = vld [vmem:[%s368 + $0x18] sm:%s361]
                %375 = vst [vmem:[%s369 + $0x8] sm:%s361] %v374
                %v376 = vld [vmem:[%s368 + $0x24] sm:%s361]
                %377 = vst [vmem:[%s369 + $0xc] sm:%s361] %v376
              $region57: #{tpu_custom_call.1} parent=51 // loop_footer
                %s367 = sadd.s32 1, %s363
              $region58: #{tpu_custom_call.1} parent=51 // loop_footer_branch
                %362 = sbr.rel target = $region54
              $region59: #{tpu_custom_call.1} parent=51 // loop_exit
                _
            $region52: #{tpu_custom_call.1} parent=43 // pred_fallthru
              _
          $region44: #{tpu_custom_call.1} parent=39 // pred_fallthru
            _
          %406 = vnop
        $region40: #{tpu_custom_call.1} parent=35 // pred_fallthru
          _
        // Predicated region
        $region78: #{tpu_custom_call.1} parent=35 // pred_check
          %p407 = pneg %p190
        $region79: #{tpu_custom_call.1} parent=35 // pred_check_branch
          %409 = sbr.rel (%p407) target = $region81
        $region80: #{tpu_custom_call.1} parent=35 // pred_region
          %s410 = sand.u32 %s180, 1
          %s411 = scalar_lea.sflag [#allocation5], %s410
          %s412 = sand.u32 %s180, 1
          %s413 = smul.addr %s412, 8
          %s414 = scalar_lea.vmem [#allocation16], %s413
          %s415 = sld [smem:[#allocation3 + %s37]]
          %417 = vsyncadd %s411, 0
          %s418 = smul.addr %s415, 2
          %s419 = smul.addr %s418, 4
          %s420 = scalar_lea.hbm %s7, %s419
          %s421 = sshll.u32 %s420, 4
          %s422 = int_to_ptr.hbm [resolvable:$true] %s421
          %s423 = sshll.u32 %s414, 4
          %s424 = int_to_ptr.vmem [resolvable:$true] %s423
          %429 = dma.hbm_to_vmem [thread:$0]  %s422, 128, %s424, %s411, 64, 64, 4
        $region81: #{tpu_custom_call.1} parent=35 // pred_fallthru
          _
        // Predicated region
        $region82: #{tpu_custom_call.1} parent=35 // pred_check
          %p430 = pneg %p218
        $region83: #{tpu_custom_call.1} parent=35 // pred_check_branch
          %432 = sbr.rel (%p430) target = $region85
        $region84: #{tpu_custom_call.1} parent=35 // pred_region
          %s433 = sld [smem:[#allocation3 + %s37]]
          %p434 = scmp.lt.s32.totalorder %s433, 2
          %s435 = scalar_select %p434, %s433, 2
          %s436 = smul.addr %s435, 2
          %s437 = smul.addr %s436, 8
          %s438 = scalar_lea.vmem %s8, %s437
          %s439 = sld [smem:[#allocation3 + %s37]]
        $region85: #{tpu_custom_call.1} parent=35 // pred_fallthru
          _
        // Predicated region
        $region86: #{tpu_custom_call.1} parent=35 // pred_check
          %p440 = pneg %p244
        $region87: #{tpu_custom_call.1} parent=35 // pred_check_branch
          %442 = sbr.rel (%p440) target = $region89
        $region88: #{tpu_custom_call.1} parent=35 // pred_region
          %s443 = sand.u32 %s234, 1
          %s444 = scalar_lea.sflag [#allocation18], %s443
          %s445 = sand.u32 %s234, 1
          %s446 = smul.addr %s445, 2
          %s447 = scalar_lea.vmem [#allocation17], %s446
          %449 = vsyncadd %s444, 0
          %s450 = smul.addr %s37, 2
          %s451 = scalar_lea.hbm %s9, %s450
          %s453 = sshll.u32 %s451, 4
          %s454 = int_to_ptr.hbm [resolvable:$true] %s453
          %s455 = sshll.u32 %s447, 4
          %s456 = int_to_ptr.vmem [resolvable:$true] %s455
          %458 = dma.hbm_to_vmem [thread:$0]  %s454, 32, %s456, %s444
        $region89: #{tpu_custom_call.1} parent=35 // pred_fallthru
          _
      $region36: #{tpu_custom_call.1} parent=5 // pred_fallthru
        _
      %p459 = scmp.le.s32.totalorder 1, %s37
      %p460 = scmp.lt.s32.totalorder %s37, 4
      %p461 = pnand %p459, %p460
      %p462 = pneg %p461
      // Predicated region
      $region90: #{tpu_custom_call.1} parent=5 // pred_check
        _
      $region91: #{tpu_custom_call.1} parent=5 // pred_check_branch
        %464 = sbr.rel (%p461) target = $region93
      $region92: #{tpu_custom_call.1} parent=5 // pred_region
        %s465 = ssub.s32 %s37, 1
        // Predicated region
        $region94: #{tpu_custom_call.1} parent=92 // pred_check
          %p466 = pneg %p58
        $region95: #{tpu_custom_call.1} parent=92 // pred_check_branch
          %468 = sbr.rel (%p466) target = $region97
        $region96: #{tpu_custom_call.1} parent=92 // pred_region
          %470 = dma.done [#allocation8], 16
        $region97: #{tpu_custom_call.1} parent=92 // pred_fallthru
          _
        // Predicated region
        $region98: #{tpu_custom_call.1} parent=92 // pred_check
          %p471 = pneg %p79
        $region99: #{tpu_custom_call.1} parent=92 // pred_check_branch
          %473 = sbr.rel (%p471) target = $region101
        $region100: #{tpu_custom_call.1} parent=92 // pred_region
          %475 = dma.done [#allocation10], 16
        $region101: #{tpu_custom_call.1} parent=92 // pred_fallthru
          _
        // Predicated region
        $region102: #{tpu_custom_call.1} parent=92 // pred_check
          %p476 = pneg %p100
        $region103: #{tpu_custom_call.1} parent=92 // pred_check_branch
          %478 = sbr.rel (%p476) target = $region105
        $region104: #{tpu_custom_call.1} parent=92 // pred_region
          %480 = dma.done [#allocation10], 16
        $region105: #{tpu_custom_call.1} parent=92 // pred_fallthru
          _
        // Predicated region
        $region106: #{tpu_custom_call.1} parent=92 // pred_check
          %p481 = pneg %p121
        $region107: #{tpu_custom_call.1} parent=92 // pred_check_branch
          %483 = sbr.rel (%p481) target = $region109
        $region108: #{tpu_custom_call.1} parent=92 // pred_region
          %485 = dma.done [#allocation13], 16
        $region109: #{tpu_custom_call.1} parent=92 // pred_fallthru
          _
        // Predicated region
        $region110: #{tpu_custom_call.1} parent=92 // pred_check
          %p486 = pneg %p142
        $region111: #{tpu_custom_call.1} parent=92 // pred_check_branch
          %488 = sbr.rel (%p486) target = $region113
        $region112: #{tpu_custom_call.1} parent=92 // pred_region
          %490 = dma.done [#allocation7], 16
        $region113: #{tpu_custom_call.1} parent=92 // pred_fallthru
          _
        %s491 = sand.u32 %s155, 1
        %s492 = sand.u32 %s155, 1
        %s493 = smul.addr %s492, 16
        %s494 = scalar_lea.vmem [#allocation15], %s493
        // Predicated region
        $region114: #{tpu_custom_call.1} parent=92 // pred_check
          %p495 = pneg %p168
        $region115: #{tpu_custom_call.1} parent=92 // pred_check_branch
          %497 = sbr.rel (%p495) target = $region117
        $region116: #{tpu_custom_call.1} parent=92 // pred_region
          _
        $region117: #{tpu_custom_call.1} parent=92 // pred_fallthru
          _
        %s498 = sand.u32 %s183, 1
        %s499 = scalar_lea.sflag [#allocation5], %s498
        %s500 = sand.u32 %s183, 1
        %s501 = smul.addr %s500, 8
        %s502 = scalar_lea.vmem [#allocation16], %s501
        // Predicated region
        $region118: #{tpu_custom_call.1} parent=92 // pred_check
          %p503 = pneg %p196
        $region119: #{tpu_custom_call.1} parent=92 // pred_check_branch
          %505 = sbr.rel (%p503) target = $region121
        $region120: #{tpu_custom_call.1} parent=92 // pred_region
          %507 = dma.done %s499, 128
        $region121: #{tpu_custom_call.1} parent=92 // pred_fallthru
          _
        %s508 = sand.u32 %s237, 1
        %s509 = scalar_lea.sflag [#allocation18], %s508
        %s510 = sand.u32 %s237, 1
        %s511 = smul.addr %s510, 2
        %s512 = scalar_lea.vmem [#allocation17], %s511
        // Predicated region
        $region122: #{tpu_custom_call.1} parent=92 // pred_check
          %p513 = pneg %p250
        $region123: #{tpu_custom_call.1} parent=92 // pred_check_branch
          %515 = sbr.rel (%p513) target = $region125
        $region124: #{tpu_custom_call.1} parent=92 // pred_region
          %517 = dma.done %s509, 32
        $region125: #{tpu_custom_call.1} parent=92 // pred_fallthru
          _
        %518 = sfence
        %p519 = pneg %p58
        %p520 = pneg %p55
        %p521 = pneg %p79
        %p522 = pneg %p76
        %p523 = pneg %p100
        %p524 = pneg %p97
        %p525 = pneg %p121
        %p526 = pneg %p118
        %p527 = pneg %p142
        %p528 = pneg %p139
        %s529 = sand.u32 %s155, 1
        %s530 = sand.u32 %s155, 1
        %s531 = smul.addr %s530, 16
        %s532 = scalar_lea.vmem [#allocation15], %s531
        %p533 = pneg %p168
        %p534 = pneg %p165
        %s535 = sand.u32 %s183, 1
        %s536 = scalar_lea.sflag [#allocation5], %s535
        %s537 = sand.u32 %s183, 1
        %s538 = smul.addr %s537, 8
        %s539 = scalar_lea.vmem [#allocation16], %s538
        %p540 = pneg %p196
        %p541 = pneg %p193
        %s542 = sld [smem:[#allocation3 + %s42]]
        %p543 = scmp.lt.s32.totalorder %s542, 2
        %s544 = scalar_select %p543, %s542, 2
        %s545 = smul.addr %s544, 2
        %s546 = smul.addr %s545, 8
        %s547 = scalar_lea.vmem %s8, %s546
        %p548 = pneg %p224
        %p549 = pneg %p221
        %s550 = sand.u32 %s237, 1
        %s551 = scalar_lea.sflag [#allocation18], %s550
        %s552 = sand.u32 %s237, 1
        %s553 = smul.addr %s552, 2
        %s554 = scalar_lea.vmem [#allocation17], %s553
        %p555 = pneg %p250
        %p556 = pneg %p247
        %p557 = pneg %p276
        %p558 = pneg %p273
        %s559 = sand.u32 %s263, 1
        %s560 = scalar_lea.sflag [#allocation6], %s559
        %s561 = sand.u32 %s263, 1
        %s562 = scalar_lea.vmem [#allocation19], %s561
        %s563 = sld [smem:[#allocation3 + %s42]]
        %s564 = sld [smem:[#allocation3 + %s42]]
        %p565 = scmp.lt.s32.totalorder %s564, 2
        %s566 = scalar_select %p565, %s564, 2
        %s567 = smul.addr %s566, 2
        %s568 = smul.addr %s567, 8
        %s569 = scalar_lea.vmem %s8, %s568
        %s570 = sld [smem:[#allocation3 + %s42]]
        %s572 = sld [smem:[#allocation4 + %s42]]
        %s573 = sld [smem:[#allocation9 + %s42]]
        %s574 = sld [smem:[#allocation11 + %s42]]
        %s575 = sld [smem:[#allocation12 + %s42]]
        %s576 = sld [smem:[#allocation14]]
        %s577 = sld [smem:[#allocation14 + $0x1]]
        %s578 = sld [smem:[#allocation14 + $0x2]]
        %s579 = sld [smem:[#allocation14 + $0x3]]
        %s580 = sld [smem:[#allocation14 + $0x4]]
        %v581 = vld [vmem:[%s502] sm:$0xf]
        %v582 = vld [vmem:[%s502 + $0x4] sm:$0xf]
        %v583 = vld [vmem:[%s494] sm:$0xf]
        %v584 = vld [vmem:[%s494 + $0x4] sm:$0xf]
        %v585 = vld [vmem:[%s494 + $0x8] sm:$0xf]
        %v586 = vld [vmem:[%s494 + $0xc] sm:$0xf]
        %v587 = vld [vmem:[%s569] sm:$0xff]
        %v588 = vld [vmem:[%s569 + $0x8] sm:$0xff]
        %590 = vset.pattern.permute.xlu0 0
        %591 = vperm.xlu0 %590, %v587
        %v592 = vpop.permute.xlu0 %591
        %595 = vset.pattern.permute.xlu0 0
        %596 = vperm.xlu0 %595, %v588
        %v597 = vpop.permute.xlu0 %596
        %v601 = vunpack.c.l.b16 %v581
        %v602 = vunpack.c.l.b16 %v582
        %v603 = vpack.c.b16 %v602, %v601
        %v608 = vunpack.c.l.b16 %v583
        %v609 = vunpack.c.l.b16 %v584
        %v610 = vunpack.c.l.b16 %v585
        %v611 = vunpack.c.l.b16 %v586
        %v612 = vpack.c.b16 %v609, %v608
        %v613 = vpack.c.b16 %v611, %v610
        %vm616 = vcmask 261120
        %v618 = vsel %vm616, %v603, 0
        %620 = vmatpush.bf16.msra.mxu0 0
        %621 = vmatpush.bf16.msra.mxu0 0
        %622 = vmatpush.bf16.msra.mxu0 0
        %623 = vmatpush.bf16.msra.mxu0 0
        %624 = vmatpush.bf16.msra.mxu0 0
        %625 = vmatpush.bf16.msra.mxu0 0
        %626 = vmatpush.bf16.msra.mxu0 %v613
        %627 = vmatpush.bf16.msra.mxu0 %v612
        %628 = vmatmul.bf16.gmra.mxu0 %v618
        %v629 = vpop.f32.mrf.mxu0
        %v630 = vadd.f32 %v592, %v629
        %v631 = vpop.f32.mrf.mxu0
        %v632 = vadd.f32 %v597, %v631
        %633 = vdwg.mxu0
        %v634 = vxor.u32 %v630, 2147483648
        %v635 = vxor.u32 %v632, 2147483648
        %v636 = vmul.f32 %v634, 1.442695
        %v637 = vpow.pop %v636
        %v638 = vmul.f32 %v635, 1.442695
        %v639 = vpow.pop %v638
        %v640 = vadd.f32 %v637, 1.0
        %v641 = vadd.f32 %v639, 1.0
        %v642 = vrcp.pop %v640
        %v643 = vmul.f32 %v640, %v642
        %v644 = vsub.f32 1.0, %v643
        %v645 = vmul.f32 %v642, %v644
        %v646 = vadd.f32 %v642, %v645
        %vm647 = vweird.f32 %v640
        %vm648 = vweird.f32 %v642
        %vm649 = vmor %vm647, %vm648
        %v650 = vsel %vm649, %v642, %v646
        %v651 = vand.u32 2147483647, %v640
        %vm652 = vcmp.eq.f32.partialorder %v651, 8.507059e+37
        %v653 = vand.u32 %v640, 2147483648
        %v654 = vor.u32 1.1754944e-38, %v653
        %v655 = vsel %vm652, %v654, %v650
        %v656 = vmul.f32 1.0, %v655
        %v657 = vrcp.pop %v641
        %v658 = vmul.f32 %v641, %v657
        %v659 = vsub.f32 1.0, %v658
        %v660 = vmul.f32 %v657, %v659
        %v661 = vadd.f32 %v657, %v660
        %vm662 = vweird.f32 %v641
        %vm663 = vweird.f32 %v657
        %vm664 = vmor %vm662, %vm663
        %v665 = vsel %vm664, %v657, %v661
        %v666 = vand.u32 2147483647, %v641
        %vm667 = vcmp.eq.f32.partialorder %v666, 8.507059e+37
        %v668 = vand.u32 %v641, 2147483648
        %v669 = vor.u32 1.1754944e-38, %v668
        %v670 = vsel %vm667, %v669, %v665
        %v671 = vmul.f32 1.0, %v670
        %v672 = vmul.f32 %v632, 1.442695
        %v673 = vpow.pop %v672
        %v674 = vlaneseq
        %v675 = vshrl.u32 %v674, 7
        %vm676 = vcmp.lt.s32.totalorder %v675, 3
        %v677 = vstv %s574
        %v678 = vstv %s575
        %v679 = vsel %vm676, %v677, %v678
        %v680 = vstv %s576
        %v681 = vstv %s577
        %v682 = vsel %vm676, %v680, %v681
        %v683 = vstv %s578
        %v684 = vstv %s579
        %v685 = vsel %vm676, %v683, %v684
        %v686 = vld [vmem:[%s512] sm:$0x1]
        %v687 = vperm.slane %v686, 0
        %v688 = vld [vmem:[%s512 + $0x1] sm:$0x1]
        %v689 = vperm.slane %v688, 0
        %vm690 = vcmask 1042432
        %v691 = vsel %vm690, %v687, %v689
        %v692 = vsub.f32 %v656, 0.5
        %v693 = vmul.f32 %v692, %v679
        %v694 = vadd.f32 %v691, %v693
        %v696 = vrot.slane %v673, 1
        %v698 = vsub.f32 %v694, %v696
        %v699 = vadd.f32 %v694, %v696
        %v700 = vmax.f32 %v698, %v682
        %v701 = vmin.f32 %v699, %v685
        %v702 = vsub.f32 %v701, %v700
        %v703 = vmax.f32 %v702, 0.0
        %v705 = vrot.slane %v703, 3
        %v707 = vmul.f32 %v703, %v705
        %v708 = vmul.f32 %v673, 4.0
        %v709 = vrot.slane %v673, 3
        %v711 = vmul.f32 %v708, %v709
        %v712 = vstv %s580
        %v713 = vadd.f32 %v711, %v712
        %v715 = vrot.slane %v707, 7
        %v717 = vsub.f32 %v713, %v715
        %v719 = vrot.slane %v717, 1
        %v721 = vrcp.pop %v719
        %v722 = vmul.f32 %v719, %v721
        %v723 = vsub.f32 1.0, %v722
        %v724 = vmul.f32 %v721, %v723
        %v725 = vadd.f32 %v721, %v724
        %vm726 = vweird.f32 %v719
        %vm727 = vweird.f32 %v721
        %vm728 = vmor %vm726, %vm727
        %v729 = vsel %vm728, %v721, %v725
        %v730 = vand.u32 2147483647, %v719
        %vm731 = vcmp.eq.f32.partialorder %v730, 8.507059e+37
        %v732 = vand.u32 %v719, 2147483648
        %v733 = vor.u32 1.1754944e-38, %v732
        %v734 = vsel %vm731, %v733, %v729
        %v735 = vmul.f32 %v707, %v734
        %v736 = vlaneseq
        %v737 = vand.u32 %v736, 127
        %v738 = vstv %s572
        %vm739 = vcmp.lt.s32.totalorder %v737, %v738
        %vm742 = vcmask 1041408
        %v743 = vrot.slane %v656, 6
        %v744 = vrot.slane %v671, 6
        %v745 = vsel %vm742, %v743, %v744
        %v747 = vmul.f32 %v735, %v745
        %v748 = vsel %vm739, %v747, -inf
        %v749 = vmul.u32 %v737, 3
        %v750 = vstv %s573
        %v751 = vadd.s32 %v750, %v749
        %v752 = vadd.s32 %v751, %v675
        %v753 = vsel %vm690, %v748, -inf
        %754 = vmax.xlane.f32.xlu0 %v753
        %v755 = vpop.xlane.xlu0 %754
        %v756 = vsel %vm690, %v755, -inf
        %v757 = vrot.slane %v756, 4
        %v758 = vmax.f32 %v756, %v757
        %v759 = vrot.slane %v758, 2
        %v760 = vmax.f32 %v758, %v759
        %v761 = vrot.slane %v760, 1
        %v762 = vmax.f32 %v760, %v761
        %vm763 = vcmp.eq.f32.partialorder %v748, %v762
        %v764 = vsel %vm763, %v752, 1073741824
        %v765 = vsel %vm690, %v764, 2147483647
        %v766 = vand.u32 %v765, 65535
        %v767 = vshra.s32 %v765, 16
        %v768 = vcvt.s32.f32 %v766
        %v769 = vcvt.s32.f32 %v767
        %770 = vmin.xlane.f32.xlu0 %v769
        %v771 = vpop.xlane.xlu0 %770
        %vm772 = vcmp.eq.f32.partialorder %v769, %v771
        %v773 = vsel %vm772, %v768, inf
        %774 = vmin.xlane.f32.xlu0 %v773
        %v775 = vpop.xlane.xlu0 %774
        %v776 = vcvt.f32.s32 %v775
        %v777 = vcvt.f32.s32 %v771
        %v778 = vshll.u32 %v777, 16
        %v779 = vadd.s32 %v778, %v776
        %v780 = vsel %vm690, %v779, 2147483647
        %v781 = vrot.slane %v780, 4
        %vm782 = vcmp.lt.s32.totalorder %v780, %v781
        %v783 = vsel %vm782, %v780, %v781
        %v784 = vrot.slane %v783, 2
        %vm785 = vcmp.lt.s32.totalorder %v783, %v784
        %v786 = vsel %vm785, %v783, %v784
        %v787 = vrot.slane %v786, 1
        %vm788 = vcmp.lt.s32.totalorder %v786, %v787
        %v789 = vsel %vm788, %v786, %v787
        %vm790 = vcmp.eq.s32.totalorder %v752, %v789
        %v791 = vsel %vm790, %v735, 0.0
        %v792 = vsel %vm690, %v791, 0.0
        %793 = vadd.xlane.f32.xlu0 %v792
        %v794 = vpop.xlane.xlu0 %793
        %v795 = vsel %vm690, %v794, 0.0
        %v796 = vrot.slane %v795, 4
        %v797 = vadd.f32 %v795, %v796
        %v798 = vrot.slane %v797, 2
        %v799 = vadd.f32 %v797, %v798
        %v800 = vrot.slane %v799, 1
        %v801 = vadd.f32 %v799, %v800
        %v802 = vsel %vm790, %v745, 0.0
        %v803 = vsel %vm690, %v802, 0.0
        %804 = vadd.xlane.f32.xlu0 %v803
        %v805 = vpop.xlane.xlu0 %804
        %v806 = vsel %vm690, %v805, 0.0
        %v807 = vrot.slane %v806, 4
        %v808 = vadd.f32 %v806, %v807
        %v809 = vrot.slane %v808, 2
        %v810 = vadd.f32 %v808, %v809
        %v811 = vrot.slane %v810, 1
        %v812 = vadd.f32 %v810, %v811
        %v813 = vsel %vm790, %v698, 0.0
        %v814 = vsel %vm690, %v813, 0.0
        %815 = vadd.xlane.f32.xlu0 %v814
        %v816 = vpop.xlane.xlu0 %815
        %v817 = vsel %vm690, %v816, 0.0
        %v818 = vrot.slane %v817, 4
        %v819 = vadd.f32 %v817, %v818
        %v820 = vrot.slane %v819, 2
        %v821 = vadd.f32 %v819, %v820
        %v822 = vrot.slane %v821, 1
        %v823 = vadd.f32 %v821, %v822
        %v825 = vrot.slane %v698, 3
        %v827 = vsel %vm790, %v825, 0.0
        %v828 = vsel %vm690, %v827, 0.0
        %829 = vadd.xlane.f32.xlu0 %v828
        %v830 = vpop.xlane.xlu0 %829
        %v831 = vsel %vm690, %v830, 0.0
        %v832 = vrot.slane %v831, 4
        %v833 = vadd.f32 %v831, %v832
        %v834 = vrot.slane %v833, 2
        %v835 = vadd.f32 %v833, %v834
        %v836 = vrot.slane %v835, 1
        %v837 = vadd.f32 %v835, %v836
        %v838 = vsel %vm790, %v699, 0.0
        %v839 = vsel %vm690, %v838, 0.0
        %840 = vadd.xlane.f32.xlu0 %v839
        %v841 = vpop.xlane.xlu0 %840
        %v842 = vsel %vm690, %v841, 0.0
        %v843 = vrot.slane %v842, 4
        %v844 = vadd.f32 %v842, %v843
        %v845 = vrot.slane %v844, 2
        %v846 = vadd.f32 %v844, %v845
        %v847 = vrot.slane %v846, 1
        %v848 = vadd.f32 %v846, %v847
        %v850 = vrot.slane %v699, 3
        %v852 = vsel %vm790, %v850, 0.0
        %v853 = vsel %vm690, %v852, 0.0
        %854 = vadd.xlane.f32.xlu0 %v853
        %v855 = vpop.xlane.xlu0 %854
        %v856 = vsel %vm690, %v855, 0.0
        %v857 = vrot.slane %v856, 4
        %v858 = vadd.f32 %v856, %v857
        %v859 = vrot.slane %v858, 2
        %v860 = vadd.f32 %v858, %v859
        %v861 = vrot.slane %v860, 1
        %v862 = vadd.f32 %v860, %v861
        %v863 = vcvt.s32.f32 %v789
        %vm864 = vcmask 7168
        %v865 = vsel %vm864, %v762, %v801
        %vm866 = vcmask 15360
        %v867 = vsel %vm866, %v865, %v812
        %vm868 = vcmask 23552
        %v869 = vsel %vm868, %v867, %v823
        %vm870 = vcmask 31744
        %v871 = vsel %vm870, %v869, %v837
        %vm872 = vcmask 39936
        %v873 = vsel %vm872, %v871, %v848
        %vm874 = vcmask 48128
        %v875 = vsel %vm874, %v873, %v862
        %vm876 = vcmask 56320
        %v877 = vsel %vm876, %v875, %v863
        %vm878 = vcmask 64512
        %v879 = vsel %vm878, %v877, 0.0
        %880 = vst [vmem:[%s562] sm:$0x1] %v879
        %s881 = sand.u32 %s263, 1
        %s882 = scalar_lea.sflag [#allocation6], %s881
        %s883 = sand.u32 %s263, 1
        %s884 = scalar_lea.vmem [#allocation19], %s883
        // Predicated region
        $region126: #{tpu_custom_call.1} parent=92 // pred_check
          %p885 = pneg %p273
        $region127: #{tpu_custom_call.1} parent=92 // pred_check_branch
          %887 = sbr.rel (%p885) target = $region129
        $region128: #{tpu_custom_call.1} parent=92 // pred_region
          %889 = vsyncadd %s882, 0
          %s890 = scalar_lea.hbm %s10, %s42
          %s892 = sshll.u32 %s884, 4
          %s893 = int_to_ptr.vmem [resolvable:$true] %s892
          %s894 = sshll.u32 %s890, 4
          %s895 = int_to_ptr.hbm [resolvable:$true] %s894
          %897 = dma.vmem_to_hbm [thread:$0]  %s893, 16, %s895, %s882
        $region129: #{tpu_custom_call.1} parent=92 // pred_fallthru
          _
      $region93: #{tpu_custom_call.1} parent=5 // pred_fallthru
        _
      %p898 = scmp.le.s32.totalorder 2, %s37
      // Predicated region
      $region130: #{tpu_custom_call.1} parent=5 // pred_check
        %p899 = pneg %p898
      $region131: #{tpu_custom_call.1} parent=5 // pred_check_branch
        %901 = sbr.rel (%p899) target = $region133
      $region132: #{tpu_custom_call.1} parent=5 // pred_region
        %s902 = ssub.s32 %s37, 2
        // Predicated region
        $region134: #{tpu_custom_call.1} parent=132 // pred_check
          %p903 = pneg %p279
        $region135: #{tpu_custom_call.1} parent=132 // pred_check_branch
          %905 = sbr.rel (%p903) target = $region137
        $region136: #{tpu_custom_call.1} parent=132 // pred_region
          %s906 = sand.u32 %s264, 1
          %s907 = scalar_lea.sflag [#allocation6], %s906
          %s908 = sand.u32 %s264, 1
          %s909 = scalar_lea.vmem [#allocation19], %s908
          %911 = dma.done %s907, 16
        $region137: #{tpu_custom_call.1} parent=132 // pred_fallthru
          _
      $region133: #{tpu_custom_call.1} parent=5 // pred_fallthru
        _
    $region6: #{tpu_custom_call.1} parent=1 // loop_footer
      %s41 = sadd.s32 1, %s37
    $region7: #{tpu_custom_call.1} parent=1 // loop_footer_branch
      %36 = sbr.rel target = $region3
    $region8: #{tpu_custom_call.1} parent=1 // loop_exit
      _
    %912 = vsyncpa [#allocation5], 1
    %s913 = scalar_lea.sflag [#allocation5], 1
    %914 = vsyncpa %s913, 1
    %915 = vsyncpa [#allocation18], 1
    %s916 = scalar_lea.sflag [#allocation18], 1
    %917 = vsyncpa %s916, 1
    %918 = vsyncpa [#allocation6], 1
    %s919 = scalar_lea.sflag [#allocation6], 1
    %920 = vsyncpa %s919, 1
    %921 = vsyncpa [#allocation7], 1
    %s922 = scalar_lea.sflag [#allocation7], 1
    %923 = vsyncpa %s922, 1
    %924 = vsyncpa [#allocation8], 1
    %s925 = scalar_lea.sflag [#allocation8], 1
    %926 = vsyncpa %s925, 1
    %927 = vsyncpa [#allocation10], 1
    %928 = vsyncpa [#allocation13], 1

</llo_original>
